<compile_context>
chip_gen: v5e
topology: v5e:2x2
jax: 0.10.0
libtpu: 0.0.40
codegen_flags: <defaults>
</compile_context>

<pallas_src>
import functools

import jax
import jax.numpy as jnp
from jax.experimental import pallas as pl
from jax.experimental.pallas import tpu as pltpu


# ----------------------------------------------------------------------- kernels
def _linear_kernel(x_ref, w_ref, b_ref, o_ref):
    # x_ref: (tm, D_in)   w_ref: (D_in, D_out)   b_ref: (1, D_out)   o_ref: (tm, D_out)
    x = x_ref[...]
    if x.dtype != w_ref.dtype:      # in-kernel cast: VMEM-local, no extra HBM pass
        x = x.astype(w_ref.dtype)
    acc = jnp.dot(x, w_ref[...], preferred_element_type=jnp.float32)
    acc = acc + b_ref[...].astype(jnp.float32)
    o_ref[...] = acc.astype(o_ref.dtype)


def _linear_kernel_ktiled(x_ref, w_ref, b_ref, o_ref, acc_ref):
    # grid = (row tiles, K tiles); K is the reduction ("arbitrary") axis, iterated last.
    k = pl.program_id(1)

    @pl.when(k == 0)
    def _():
        acc_ref[...] = jnp.zeros_like(acc_ref)

    x = x_ref[...]
    if x.dtype != w_ref.dtype:
        x = x.astype(w_ref.dtype)
    acc_ref[...] += jnp.dot(x, w_ref[...], preferred_element_type=jnp.float32)

    @pl.when(k == pl.num_programs(1) - 1)
    def _():
        o_ref[...] = (acc_ref[...] + b_ref[...].astype(jnp.float32)).astype(o_ref.dtype)


# ----------------------------------------------------------------- tiling heuristics
def _sublane(dtype):
    itemsize = jnp.dtype(dtype).itemsize
    if itemsize >= 4:
        return 8
    if itemsize == 2:
        return 16
    return 32


def _vmem_budget():
    """(vmem_limit_bytes, heuristic_budget_bytes), generation aware."""
    cap = 64 << 20                                # conservative default = v7x physical
    try:
        info = pltpu.get_tpu_info()
        cap = getattr(info, "vmem_capacity_bytes", cap) or cap
    except Exception:
        pass
    if cap >= (128 << 20):                        # v5e / v6e: 128 MiB physical VMEM
        limit = 96 << 20
    else:                                         # v7x: 64 MiB physical -> <= ~48 MiB scoped
        limit = 48 << 20
    return limit, (limit * 3) // 4                # heuristic uses 75% of the limit


def _round_rows(rows, M, sublane, max_rows, min_grid_steps):
    rows = max(sublane, (rows // sublane) * sublane)
    rows = min(rows, max_rows)
    if M > min_grid_steps * sublane:
        # keep >= min_grid_steps row steps: DMA/compute pipelining + v7x 2-TC sharding
        per_step = -(-M // min_grid_steps)
        per_step = max(sublane, (per_step // sublane) * sublane)
        rows = min(rows, per_step)
    if rows >= M:
        return M
    return rows


def _pick_block_rows(M, D_in, D_out, x_itemsize, w_itemsize, out_itemsize, sublane,
                     budget_bytes, max_rows=2048, min_grid_steps=8):
    """Row tile for the single-pass (full-K) kernel, or None if the resident weight
    does not fit the VMEM budget (caller then switches to the K-tiled path)."""
    fixed = D_in * D_out * w_itemsize + D_out * 4          # weight + bias, single-buffered
    per_row = (2 * D_in * x_itemsize                        # double-buffered x row
               + 2 * D_out * out_itemsize                   # double-buffered out row
               + D_out * 4)                                 # f32 matmul result temporary
    avail = budget_bytes - fixed
    if avail < per_row * sublane:
        return None
    return _round_rows(avail // per_row, M, sublane, max_rows, min_grid_steps)


def _pick_block_rows_ktiled(M, block_k, D_out, x_itemsize, w_itemsize, out_itemsize,
                            sublane, budget_bytes, max_rows=1024, min_grid_steps=8):
    fixed = 2 * block_k * D_out * w_itemsize + D_out * 4    # double-buffered w tile + bias
    per_row = (2 * block_k * x_itemsize
               + 2 * D_out * out_itemsize
               + D_out * 4)                                  # f32 accumulator scratch
    avail = max(budget_bytes - fixed, per_row * sublane)
    return _round_rows(avail // per_row, M, sublane, max_rows, min_grid_steps)


def _pick_block_k(D_in):
    for cand in (2048, 1024, 512, 256, 128):
        if D_in % cand == 0:
            return cand
    return None


# ----------------------------------------------------------------------- forward
@functools.partial(jax.jit,
                   static_argnames=("out_dim", "block_rows", "block_k", "out_dtype"))
def linear_projection(hs, weight_t, bias, out_dim=None, block_rows=None,
                      block_k=None, out_dtype=None):
    """Forward of LinearProjection (eval mode: dropout == identity).

    hs:       (B, S, D_in) activations.
    weight_t: (D_in, D_out_padded) -- nn.Linear weight transposed ONCE at init time,
              stored in the compute dtype (bf16 recommended), D_out padded to x128.
    bias:     (D_out_padded,) float32.
    out_dim:  logical output dim (init-time lane padding sliced off); default = padded.
    out_dtype: output dtype (default hs.dtype); pass jnp.bfloat16 to halve writeback.
    """
    B, S, D_in = hs.shape
    D_out_p = weight_t.shape[1]
    M = B * S
    out_dim = D_out_p if out_dim is None else out_dim
    out_dtype = hs.dtype if out_dtype is None else out_dtype

    x2d = hs.reshape(M, D_in)
    b2d = bias.reshape(1, D_out_p)

    x_itemsize = jnp.dtype(x2d.dtype).itemsize
    w_itemsize = jnp.dtype(weight_t.dtype).itemsize
    out_itemsize = jnp.dtype(out_dtype).itemsize
    sub = _sublane(x2d.dtype)

    vmem_limit, budget = _vmem_budget()

    if block_k is None and block_rows is None:
        block_rows = _pick_block_rows(M, D_in, D_out_p, x_itemsize, w_itemsize,
                                      out_itemsize, sub, budget)
        if block_rows is None:
            # Resident weight does not fit the VMEM budget -> tile the K (D_in) axis.
            block_k = _pick_block_k(D_in)
            if block_k is None:
                # TODO(synk): D_in not divisible by a >=128 tile; pad D_in at init time
                #             instead of this tiny-row fallback.
                block_rows = sub

    cost = pl.CostEstimate(
        flops=2 * M * D_in * D_out_p,
        transcendentals=0,
        bytes_accessed=(M * D_in * x_itemsize + D_in * D_out_p * w_itemsize
                        + M * D_out_p * out_itemsize + D_out_p * 4),
    )
    compiler_params_1d = pltpu.CompilerParams(
        dimension_semantics=("parallel",),            # rows independent -> megacore-shardable
        vmem_limit_bytes=vmem_limit,
    )
    compiler_params_2d = pltpu.CompilerParams(
        dimension_semantics=("parallel", "arbitrary"),
        vmem_limit_bytes=vmem_limit,
    )

    if block_k is not None:
        assert D_in % block_k == 0, "block_k must divide the input dim"
        if block_rows is None:
            block_rows = _pick_block_rows_ktiled(M, block_k, D_out_p, x_itemsize,
                                                 w_itemsize, out_itemsize, sub, budget)
        grid = (pl.cdiv(M, block_rows), D_in // block_k)
        out2d = pl.pallas_call(
            _linear_kernel_ktiled,
            out_shape=jax.ShapeDtypeStruct((M, D_out_p), out_dtype),
            grid_spec=pltpu.PrefetchScalarGridSpec(
                num_scalar_prefetch=0,
                grid=grid,
                in_specs=[
                    pl.BlockSpec((block_rows, block_k), lambda i, k: (i, k)),
                    pl.BlockSpec((block_k, D_out_p), lambda i, k: (k, 0)),
                    pl.BlockSpec((1, D_out_p), lambda i, k: (0, 0),
                                 pipeline_mode=pl.Buffered(1)),   # constant -> single buffer
                ],
                out_specs=pl.BlockSpec((block_rows, D_out_p), lambda i, k: (i, 0)),
                scratch_shapes=[pltpu.VMEM((block_rows, D_out_p), jnp.float32)],
            ),
            compiler_params=compiler_params_2d,
            cost_estimate=cost,
        )(x2d, weight_t, b2d)
    else:
        grid = (pl.cdiv(M, block_rows),)
        out2d = pl.pallas_call(
            _linear_kernel,
            out_shape=jax.ShapeDtypeStruct((M, D_out_p), out_dtype),
            grid_spec=pltpu.PrefetchScalarGridSpec(
                num_scalar_prefetch=0,
                grid=grid,
                in_specs=[
                    # TODO(synk): on v5e with very small D_out, pipeline_mode=pl.Buffered(3)
                    #             here can deepen the x pipeline if DMA is exposed.
                    pl.BlockSpec((block_rows, D_in), lambda i: (i, 0)),
                    # constant index_map -> fetched once; single-buffered to save VMEM
                    pl.BlockSpec((D_in, D_out_p), lambda i: (0, 0),
                                 pipeline_mode=pl.Buffered(1)),
                    pl.BlockSpec((1, D_out_p), lambda i: (0, 0),
                                 pipeline_mode=pl.Buffered(1)),
                ],
                out_specs=pl.BlockSpec((block_rows, D_out_p), lambda i: (i, 0)),
            ),
            compiler_params=compiler_params_1d,
            cost_estimate=cost,
        )(x2d, weight_t, b2d)

    out = out2d.reshape(B, S, D_out_p)
    if out_dim != D_out_p:
        out = out[..., :out_dim]      # strip init-time lane padding outside the kernel
    return out


def init_linear_params(key, input_dim, output_dim, dtype=jnp.float32,
                       weight_dtype=jnp.bfloat16, pad_to=128):
    """PyTorch-style nn.Linear init (uniform +-1/sqrt(fan_in)).

    Returns (weight_t, bias, out_dim):
      weight_t: (input_dim, padded_output_dim) in weight_dtype, transposed once here.
      bias:     (padded_output_dim,) float32 (f32 bias add inside the kernel).
    Output dim is zero-padded to a multiple of 128 so kernel stores are lane-dense.
    """
    k_w, k_b = jax.random.split(key)
    bound = 1.0 / (input_dim ** 0.5)
    weight = jax.random.uniform(k_w, (output_dim, input_dim), dtype,
                                minval=-bound, maxval=bound)
    bias = jax.random.uniform(k_b, (output_dim,), jnp.float32,
                              minval=-bound, maxval=bound)
    d_pad = (-output_dim) % pad_to
    weight_t = weight.T
    if d_pad:
        weight_t = jnp.pad(weight_t, ((0, 0), (0, d_pad)))
        bias = jnp.pad(bias, (0, d_pad))
    return weight_t.astype(weight_dtype), bias, output_dim


if __name__ == "__main__":
    key = jax.random.PRNGKey(0)
    k_x, k_p, k_x2, k_p2, k_x3, k_p3 = jax.random.split(key, 6)

    # --- Small case matching the module's toy config (f32 weights, tight check) ---
    batch, seq, input_dim, output_dim = 2, 8, 32, 16
    dropout_rate = 0.1   # identity in eval mode

    hs = jax.random.normal(k_x, (batch, seq, input_dim), dtype=jnp.float32)
    w_t, b, od = init_linear_params(k_p, input_dim, output_dim,
                                    weight_dtype=jnp.float32)
    out = jax.block_until_ready(linear_projection(hs, w_t, b, out_dim=od))
    ref = (jnp.matmul(hs, w_t.astype(jnp.float32),
                      precision=jax.lax.Precision.HIGHEST) + b)[..., :od]
    assert out.shape == (batch, seq, output_dim)
    assert jnp.allclose(out, ref, atol=1e-5, rtol=1e-5)

    # --- Larger case: multi-step pipelined grid, bf16 weights (default), in-kernel x cast ---
    B2, S2, D_in2, D_out2 = 8, 1024, 128, 128     # M = 8192 -> 1024-row tiles, grid (8,)
    hs2 = jax.random.normal(k_x2, (B2, S2, D_in2), dtype=jnp.float32)
    w2_t, b2, od2 = init_linear_params(k_p2, D_in2, D_out2)          # bf16 weight default
    out2 = jax.block_until_ready(linear_projection(hs2, w2_t, b2, out_dim=od2))
    ref2 = (jnp.matmul(hs2, w2_t.astype(jnp.float32),
                       precision=jax.lax.Precision.HIGHEST) + b2)[..., :od2]
    assert out2.shape == (B2, S2, D_out2)
    assert float(jnp.max(jnp.abs(out2 - ref2))) < 0.1    # bf16 MXU operands, f32 accum

    # bf16 output path (halves writeback HBM traffic)
    out2_bf16 = jax.block_until_ready(
        linear_projection(hs2, w2_t, b2, out_dim=od2, out_dtype=jnp.bfloat16))
    assert out2_bf16.dtype == jnp.bfloat16
    assert float(jnp.max(jnp.abs(out2_bf16.astype(jnp.float32) - ref2))) < 0.15

    # --- K-tiled path (large-D_in fallback), exercised explicitly via block_k ---
    B3, S3, D_in3, D_out3 = 2, 256, 256, 128
    hs3 = jax.random.normal(k_x3, (B3, S3, D_in3), dtype=jnp.float32)
    w3_t, b3, od3 = init_linear_params(k_p3, D_in3, D_out3, weight_dtype=jnp.float32)
    out3 = jax.block_until_ready(
        linear_projection(hs3, w3_t, b3, out_dim=od3, block_k=128))
    ref3 = (jnp.matmul(hs3, w3_t, precision=jax.lax.Precision.HIGHEST) + b3)[..., :od3]
    assert out3.shape == (B3, S3, D_out3)
    assert jnp.allclose(out3, ref3, atol=5e-4, rtol=5e-4)

    print("KERNEL_OK")
</pallas_src>

<mosaic_0001>
module attributes {stable_mosaic.version = 11 : i64} {
  func.func @_linear_kernel(%arg0: i32, %arg1: memref<16x32xf32, #tpu.memory_space<vmem>>, %arg2: memref<32x128xf32, #tpu.memory_space<vmem>>, %arg3: memref<1x128xf32, #tpu.memory_space<vmem>>, %arg4: memref<16x128xf32, #tpu.memory_space<vmem>>) attributes {dimension_semantics = [#tpu.dimension_semantics<parallel>], iteration_bounds = array<i64: 1>, scalar_prefetch = 0 : i64, scratch_operands = 0 : i64, tpu.core_type = #tpu.core_type<tc>, window_params = [{transform_indices = @transform_0, window_bounds = array<i64: 16, 32>}, {pipeline_mode = #tpu.pipeline_mode<synchronous>, transform_indices = @transform_1, window_bounds = array<i64: 32, 128>}, {pipeline_mode = #tpu.pipeline_mode<synchronous>, transform_indices = @transform_2, window_bounds = array<i64: 1, 128>}, {transform_indices = @transform_3, window_bounds = array<i64: 16, 128>}]} {
    %c0 = arith.constant 0 : index
    %c0_0 = arith.constant 0 : index
    %0 = vector.load %arg1[%c0, %c0_0] : memref<16x32xf32, #tpu.memory_space<vmem>>, vector<16x32xf32>
    %c0_1 = arith.constant 0 : index
    %c0_2 = arith.constant 0 : index
    %1 = vector.load %arg2[%c0_1, %c0_2] : memref<32x128xf32, #tpu.memory_space<vmem>>, vector<32x128xf32>
    %cst = arith.constant dense<0.000000e+00> : vector<16x128xf32>
    %2 = tpu.matmul %0, %1, %cst {dimension_numbers = #tpu.dot_dimension_numbers<[1], [0], [0], [1], [0, 0, 1, 1], [], []>} : vector<16x32xf32>, vector<32x128xf32>, vector<16x128xf32> -> vector<16x128xf32>
    %c0_3 = arith.constant 0 : index
    %c0_4 = arith.constant 0 : index
    %3 = vector.load %arg3[%c0_3, %c0_4] : memref<1x128xf32, #tpu.memory_space<vmem>>, vector<1x128xf32>
    %4 = vector.broadcast %3 : vector<1x128xf32> to vector<16x128xf32>
    %5 = arith.addf %2, %4 : vector<16x128xf32>
    %c0_5 = arith.constant 0 : index
    %c0_6 = arith.constant 0 : index
    %6 = vector.load %arg4[%c0_5, %c0_6] : memref<16x128xf32, #tpu.memory_space<vmem>>, vector<16x128xf32>
    tpu.vector_store %arg4[%c0_5, %c0_6], %5 {strides = array<i32>} : memref<16x128xf32, #tpu.memory_space<vmem>>, vector<16x128xf32>,
    return
  }
  func.func @transform_0(%arg0: i32) -> (i32, i32) {
    %c0_i32 = arith.constant 0 : i32
    %c0_i32_0 = arith.constant 0 : i32
    return %arg0, %c0_i32 : i32, i32
  }
  func.func @transform_1(%arg0: i32) -> (i32, i32) {
    %c0_i32 = arith.constant 0 : i32
    %c0_i32_0 = arith.constant 0 : i32
    %c0_i32_1 = arith.constant 0 : i32
    return %c0_i32, %c0_i32_0 : i32, i32
  }
  func.func @transform_2(%arg0: i32) -> (i32, i32) {
    %c0_i32 = arith.constant 0 : i32
    %c0_i32_0 = arith.constant 0 : i32
    %c0_i32_1 = arith.constant 0 : i32
    return %c0_i32, %c0_i32_0 : i32, i32
  }
  func.func @transform_3(%arg0: i32) -> (i32, i32) {
    %c0_i32 = arith.constant 0 : i32
    %c0_i32_0 = arith.constant 0 : i32
    return %arg0, %c0_i32 : i32, i32
  }
}

</mosaic_0001>

<llo_original>
// kernel: linear_projection.1
$region0: #{linear_projection.1}
  #allocation0 [shape = 'u32[]', space=smem, size = 0x4, offset = 0x4, fixed_abs, tag = 'smem constant byte address 0x4 - core index']
  #allocation1 [shape = 'u32[72,128]{1,0:T(1,128)}', space=vmem, size = 0x9000, scoped, tag = 'internal scratch']
  %s0 = inlined_call_operand.hbm [shape: f32[16,32], index: 0, kind: input, shape index: {}]
  %s1 = inlined_call_operand.hbm [shape: f32[32,128], index: 1, kind: input, shape index: {}]
  %s2 = inlined_call_operand.vmem [shape: f32[1,128], index: 2, kind: input, shape index: {}]
  %s3 = inlined_call_operand.hbm [shape: f32[16,128], index: 3, kind: output, shape index: {}]
  %s4 = sld [smem:[#allocation0]]
  $region30: #{linear_projection.1} parent=0
    _
  %s6 = ssub.s32 1, %s4
  %s7 = scalar_select 0, %s6, %s4
  $region1: #{linear_projection.1} parent=0
    #allocation2 [shape = 'u8[8192]{0}', space=vmem, size = 0x2000, scoped, tag = 'input window, operand 0, single buffered']
    #allocation3 [shape = 's32[1]{0}', space=sflag, size = 0x4, scoped, tag = 'scoped memory for linear_projection.1']
    #allocation4 [shape = 's32[1]{0}', space=sflag, size = 0x4, scoped, tag = 'scoped memory for linear_projection.1']
    #allocation5 [shape = 'u8[16384]{0}', space=vmem, size = 0x4000, scoped, tag = 'input window, operand 1, single buffered']
    #allocation6 [shape = 's32[1]{0}', space=sflag, size = 0x4, scoped, tag = 'scoped memory for linear_projection.1']
    #allocation7 [shape = 'u8[8192]{0}', space=vmem, size = 0x2000, scoped, tag = 'output window, operand 0, single buffered']
    %8 = vsyncpa [#allocation3], 0
    %9 = vsyncpa [#allocation6], 0
    %10 = vsyncpa [#allocation4], 0
    // Predicated region
    $region2: #{linear_projection.1} parent=1 // pred_check
      _
    $region3: #{linear_projection.1} parent=1 // pred_check_branch
      %12 = sbr.rel (0) target = $region5
    $region4: #{linear_projection.1} parent=1 // pred_region
      %14 = vsyncadd [#allocation3], 0
      %s15 = sshll.u32 %s0, 4
      %s16 = int_to_ptr.hbm [resolvable:$true] %s15
      %s17 = sshll.u32 [#allocation2], 4
      %s18 = int_to_ptr.vmem [resolvable:$true] %s17
      %23 = dma.hbm_to_vmem [thread:$0]  %s16, 256, %s18, [#allocation3], 128, 128, 8
    $region5: #{linear_projection.1} parent=1 // pred_fallthru
      _
    // Predicated region
    $region6: #{linear_projection.1} parent=1 // pred_check
      _
    $region7: #{linear_projection.1} parent=1 // pred_check_branch
      %25 = sbr.rel (0) target = $region9
    $region8: #{linear_projection.1} parent=1 // pred_region
      %27 = vsyncadd [#allocation6], 0
      %s28 = sshll.u32 %s1, 4
      %s29 = int_to_ptr.hbm [resolvable:$true] %s28
      %s30 = sshll.u32 [#allocation5], 4
      %s31 = int_to_ptr.vmem [resolvable:$true] %s30
      %36 = dma.hbm_to_vmem [thread:$0]  %s29, 512, %s31, [#allocation6], 128, 128, 8
    $region9: #{linear_projection.1} parent=1 // pred_fallthru
      _
    // Predicated region
    $region10: #{linear_projection.1} parent=1 // pred_check
      _
    $region11: #{linear_projection.1} parent=1 // pred_check_branch
      %38 = sbr.rel (0) target = $region13
    $region12: #{linear_projection.1} parent=1 // pred_region
      _
    $region13: #{linear_projection.1} parent=1 // pred_fallthru
      _
    // Predicated region
    $region14: #{linear_projection.1} parent=1 // pred_check
      _
    $region15: #{linear_projection.1} parent=1 // pred_check_branch
      %40 = sbr.rel (0) target = $region17
    $region16: #{linear_projection.1} parent=1 // pred_region
      %42 = dma.done [#allocation3], 256
    $region17: #{linear_projection.1} parent=1 // pred_fallthru
      _
    // Predicated region
    $region18: #{linear_projection.1} parent=1 // pred_check
      _
    $region19: #{linear_projection.1} parent=1 // pred_check_branch
      %44 = sbr.rel (0) target = $region21
    $region20: #{linear_projection.1} parent=1 // pred_region
      %46 = dma.done [#allocation6], 512
    $region21: #{linear_projection.1} parent=1 // pred_fallthru
      _
    %v47 = vld [vmem:[#allocation2] sm:$0xff]
    %v48 = vld [vmem:[#allocation2 + $0x8] sm:$0xff]
    %v49 = vld [vmem:[#allocation5] sm:$0xff]
    %v50 = vld [vmem:[#allocation5 + $0x8] sm:$0xff]
    %v51 = vld [vmem:[#allocation5 + $0x10] sm:$0xff]
    %v52 = vld [vmem:[#allocation5 + $0x18] sm:$0xff]
    %v53 = vld [vmem:[%s2] sm:$0x1]
    %v55 = vperm.slane %v53, 0
    %vm57 = vcmask 261120
    %v59 = vsel %vm57, %v47, 0
    %v62 = vsel %vm57, %v48, 0
    %64 = vmatpush.msra.mxu0 0.0
    %65 = vmatpush.msra.mxu0 0.0
    %66 = vmatpush.msra.mxu0 0.0
    %67 = vmatpush.msra.mxu0 0.0
    %68 = vmatpush.msra.mxu0 0.0
    %69 = vmatpush.msra.mxu0 0.0
    %70 = vmatpush.msra.mxu0 0.0
    %71 = vmatpush.msra.mxu0 0.0
    %72 = vmatpush.msra.mxu0 0.0
    %73 = vmatpush.msra.mxu0 0.0
    %74 = vmatpush.msra.mxu0 0.0
    %75 = vmatpush.msra.mxu0 0.0
    %76 = vmatpush.msra.mxu0 %v52
    %77 = vmatpush.msra.mxu0 %v51
    %78 = vmatpush.msra.mxu0 %v50
    %79 = vmatpush.msra.mxu0 %v49
    %80 = vmatmul.f32.gmra.mxu0 %v59
    %v81 = vpop.f32.mrf.mxu0
    %v82 = vadd.f32 %v55, %v81
    %83 = vmatmul.f32.gmra.mxu0 %v62
    %v84 = vpop.f32.mrf.mxu0
    %v85 = vadd.f32 %v55, %v84
    %86 = vdwg.mxu0
    %87 = vst [vmem:[#allocation7] sm:$0xff] %v82
    %88 = vst [vmem:[#allocation7 + $0x8] sm:$0xff] %v85
    // Predicated region
    $region22: #{linear_projection.1} parent=1 // pred_check
      _
    $region23: #{linear_projection.1} parent=1 // pred_check_branch
      %90 = sbr.rel (0) target = $region25
    $region24: #{linear_projection.1} parent=1 // pred_region
      %92 = vsyncadd [#allocation4], 0
      %s93 = sshll.u32 [#allocation7], 4
      %s94 = int_to_ptr.vmem [resolvable:$true] %s93
      %s95 = sshll.u32 %s3, 4
      %s96 = int_to_ptr.hbm [resolvable:$true] %s95
      %101 = dma.vmem_to_hbm [thread:$0]  %s94, 256, %s96, [#allocation4], 128, 128, 8
    $region25: #{linear_projection.1} parent=1 // pred_fallthru
      _
    // Predicated region
    $region26: #{linear_projection.1} parent=1 // pred_check
      _
    $region27: #{linear_projection.1} parent=1 // pred_check_branch
      %103 = sbr.rel (0) target = $region29
    $region28: #{linear_projection.1} parent=1 // pred_region
      %105 = dma.done [#allocation4], 256
    $region29: #{linear_projection.1} parent=1 // pred_fallthru
      _
    %106 = vsyncpa [#allocation3], 1
    %107 = vsyncpa [#allocation6], 1
    %108 = vsyncpa [#allocation4], 1

</llo_original>
